<compile_context>
chip_gen: v7x
topology: tpu7x:2x2x1
jax: 0.10.0
libtpu: 0.0.40
codegen_flags: <defaults>
</compile_context>

<pallas_src>
import functools

import numpy as np
import jax
import jax.numpy as jnp
from jax.experimental import pallas as pl
from jax.experimental.pallas import tpu as pltpu

IGNORE_INDEX = 255


def _round_up(x, m):
    return ((x + m - 1) // m) * m


def _tpu_vmem_bytes():
    try:
        info = pltpu.get_tpu_info()
        for attr in ("vmem_capacity_bytes", "vmem_size_bytes", "vmem_bytes"):
            v = getattr(info, attr, None)
            if v:
                return int(v)
    except Exception:
        pass
    return 64 << 20  # conservative fallback (v7x physical VMEM)


_VMEM_BYTES = _tpu_vmem_bytes()
# Per-step per-call block budget: ~1/8 of physical VMEM
# (≈16 MiB on v5e/v6e's 128 MiB, ≈8 MiB on v7x's 64 MiB).
_BLOCK_BYTES_CAP = max(4 << 20, _VMEM_BYTES // 8)


def _vmem_limit(step_bytes):
    # double-buffered blocks + headroom, capped at 75% of physical VMEM
    return int(min(max(2 * step_bytes + (16 << 20), 32 << 20),
                   (_VMEM_BYTES * 3) // 4))


def _pick_row_tile(h, per_row_bytes):
    """Row tile near the byte cap; full extent if it fits, else a multiple of 8.
    The grid uses pl.cdiv(h, tile); the tail is masked in-kernel."""
    cap_rows = max(1, _BLOCK_BYTES_CAP // max(per_row_bytes, 1))
    if h <= cap_rows:
        return h                       # single block, full-dim => layout-legal
    return max(8, (cap_rows // 8) * 8)


def _pick_sub_tile(s, per_sub_bytes):
    """Same policy for the pair kernel's sublane (pixel-row) axis."""
    cap_sub = max(1, _BLOCK_BYTES_CAP // max(per_sub_bytes, 1))
    if s <= cap_sub:
        return s
    return max(8, (cap_sub // 8) * 8)


def _pack_lanes(vals):
    """Pack a few scalars into lanes 0..k of sublane 0 of a full (8,128) tile."""
    lane = jax.lax.broadcasted_iota(jnp.int32, (8, 128), 1)
    sub = jax.lax.broadcasted_iota(jnp.int32, (8, 128), 0)
    row0 = sub == 0
    out = jnp.zeros((8, 128), jnp.float32)
    for k, v in enumerate(vals):
        out = out + jnp.where(row0 & (lane == k), v, 0.0)
    return out


# ----------------------------------------------------------------------------
# Kernel 1: fused ce + ex_ce over the full logits (single HBM pass)
# ----------------------------------------------------------------------------
def _ce_fused_kernel(boxes_ref, logit_ref, label_ref, out_ref, *,
                     row_tile, n_rows, n_channels, ignore_index):
    n = pl.program_id(0)
    rt = pl.program_id(1)

    @pl.when(rt == 0)
    def _():
        out_ref[...] = jnp.zeros_like(out_ref)

    x = logit_ref[...].astype(jnp.float32)            # (C, TH, W)
    lbl = label_ref[0]                                # (TH, W) int32

    # channel reductions over the leading (non-vreg) axis -> pure VPU work
    m = jnp.max(x, axis=0)                            # (TH, W)
    sumexp = jnp.zeros_like(m)
    picked_s = jnp.zeros_like(m)                      # picked logit, shifted by m
    for c in range(n_channels):                       # short unrolled channel loop
        xs_c = x[c] - m
        sumexp = sumexp + jnp.exp(xs_c)
        picked_s = picked_s + jnp.where(lbl == c, xs_c, 0.0)

    # row/col indices for tail masking + ex_labels ignore-box rebuild
    r = rt * row_tile + jax.lax.broadcasted_iota(jnp.int32, lbl.shape, 0)
    col = jax.lax.broadcasted_iota(jnp.int32, lbl.shape, 1)
    in_bounds = r < n_rows

    # sanitize once against garbage in the (possibly partial) tail block
    nll = jnp.where(in_bounds, jnp.log(sumexp) - picked_s, 0.0)   # (TH, W)

    validf = ((lbl != ignore_index) & in_bounds).astype(jnp.float32)

    y0 = boxes_ref[n, 0]
    y1 = boxes_ref[n, 1]
    x0 = boxes_ref[n, 2]
    x1 = boxes_ref[n, 3]
    in_box = (r >= y0) & (r < y1) & (col >= x0) & (col < x1)
    ex_validf = validf * jnp.logical_not(in_box).astype(jnp.float32)

    ce_s = jnp.sum(nll * validf)
    ce_c = jnp.sum(validf)
    ex_s = jnp.sum(nll * ex_validf)
    ex_c = jnp.sum(ex_validf)

    out_ref[...] += _pack_lanes([ce_s, ce_c, ex_s, ex_c])


def fused_cross_entropy(seg, labels, boxes, ignore_index=IGNORE_INDEX):
    """nn.CrossEntropyLoss(ignore_index, 'mean') vs labels AND vs ex_labels
    (labels with each image's overlap box ignored), in one pass over seg.
    seg can be bf16 or f32; it is streamed in its native dtype and upcast
    inside the kernel."""
    N, C, H, W = seg.shape
    itemsize = jnp.dtype(seg.dtype).itemsize
    lb = labels.astype(jnp.int32).reshape(N, 1, H, W)

    row_tile = _pick_row_tile(H, C * W * itemsize)
    n_rt = pl.cdiv(H, row_tile)
    step_bytes = C * row_tile * W * itemsize + row_tile * W * 4 + 8 * 128 * 4

    kernel = functools.partial(_ce_fused_kernel, row_tile=row_tile, n_rows=H,
                               n_channels=C, ignore_index=ignore_index)
    partials = pl.pallas_call(
        kernel,
        out_shape=jax.ShapeDtypeStruct((N, 8, 128), jnp.float32),
        grid_spec=pltpu.PrefetchScalarGridSpec(
            num_scalar_prefetch=1,
            grid=(N, n_rt),
            in_specs=[
                pl.BlockSpec((None, C, row_tile, W), lambda n, t, bx: (n, 0, t, 0)),
                pl.BlockSpec((None, 1, row_tile, W), lambda n, t, bx: (n, 0, t, 0)),
            ],
            # one accumulator block per image, resident across the row-tile axis
            out_specs=pl.BlockSpec((None, 8, 128), lambda n, t, bx: (n, 0, 0)),
        ),
        compiler_params=pltpu.CompilerParams(
            dimension_semantics=("parallel", "arbitrary"),
            vmem_limit_bytes=_vmem_limit(step_bytes)),
    )(boxes, seg, lb)

    totals = jnp.sum(partials[:, 0, :4], axis=0)
    # TODO(synk): like torch's 'mean' CE, the divides are unguarded if there are
    # zero valid pixels (all labels ignored / ex-box covers every valid pixel).
    ce = totals[0] / totals[1]
    ex_ce = totals[2] / totals[3]
    return ce, ex_ce


# ----------------------------------------------------------------------------
# Kernel 2: batched overlap-pair losses (MSE sum + both CE sums w/ argmax labels)
# ----------------------------------------------------------------------------
def _pair_kernel(npix_ref, x1_ref, x2_ref, out_ref, *, sub_tile, n_channels):
    i = pl.program_id(0)
    t = pl.program_id(1)

    @pl.when(t == 0)
    def _():
        out_ref[...] = jnp.zeros_like(out_ref)

    npix = npix_ref[i]

    # skip fully-padded tiles of small overlap pairs entirely
    @pl.when(t * (sub_tile * 128) < npix)
    def _():
        x1 = x1_ref[...].astype(jnp.float32)          # (C, T, 128)
        x2 = x2_ref[...].astype(jnp.float32)

        sub = jax.lax.broadcasted_iota(jnp.int32, (sub_tile, 128), 0)
        lane = jax.lax.broadcasted_iota(jnp.int32, (sub_tile, 128), 1)
        pix = (t * sub_tile + sub) * 128 + lane
        valid = pix < npix                            # (T, 128)

        d = x1 - x2
        mse_s = jnp.sum(jnp.where(valid, jnp.sum(d * d, axis=0), 0.0))

        # per-operand reductions computed once and reused for both CE directions;
        # channel axis is leading -> VPU adds/maxes, no cross-sublane shuffles
        iota_c = jax.lax.broadcasted_iota(jnp.int32, x1.shape, 0)
        m1 = jnp.max(x1, axis=0, keepdims=True)
        m2 = jnp.max(x2, axis=0, keepdims=True)
        lse1 = m1[0] + jnp.log(jnp.sum(jnp.exp(x1 - m1), axis=0))
        lse2 = m2[0] + jnp.log(jnp.sum(jnp.exp(x2 - m2), axis=0))
        # first-occurrence argmax (matches torch.argmax tie-breaking)
        idx1 = jnp.min(jnp.where(x1 == m1, iota_c, n_channels), axis=0)
        idx2 = jnp.min(jnp.where(x2 == m2, iota_c, n_channels), axis=0)
        oh1 = (iota_c == idx1[None]).astype(jnp.float32)
        oh2 = (iota_c == idx2[None]).astype(jnp.float32)

        picked12 = jnp.sum(oh2 * x1, axis=0)          # CE(img1 logits, argmax(img2))
        picked21 = jnp.sum(oh1 * x2, axis=0)          # CE(img2 logits, argmax(img1))
        ce12_s = jnp.sum(jnp.where(valid, lse1 - picked12, 0.0))
        ce21_s = jnp.sum(jnp.where(valid, lse2 - picked21, 0.0))

        out_ref[...] += _pack_lanes([mse_s, ce12_s, ce21_s])


def pair_losses(seg, overlap, flips):
    """Per-pair overlap losses, batched into one kernel over padded crops."""
    N, C, H, W = seg.shape
    len_img = N // 2
    itemsize = jnp.dtype(seg.dtype).itemsize

    meta = []
    npix_static = []
    p_max = 1
    for i in range(len_img):
        (y10, x10), (y11, x11) = overlap[i][0]
        (y20, x20), (y21, x21) = overlap[i][1]
        h1, w1 = y11 - y10, x11 - x10
        h2, w2 = y21 - y20, x21 - x20
        ok = h1 >= 1 and w1 >= 1 and h2 >= 1 and w2 >= 1
        if ok:
            assert h1 * w1 == h2 * w2, (
                f"overlap crops of pair {i} differ in size: {h1}x{w1} vs {h2}x{w2}")
            p_max = max(p_max, h1 * w1)
        meta.append((y10, x10, y11, x11, y20, x20, y21, x21, ok))
        npix_static.append(h1 * w1 if ok else 0)
    p_pad = _round_up(p_max, 128)
    s_total = p_pad // 128

    # Crops laid out as (C, S, 128): channels on the leading (non-vreg) axis so
    # in-kernel channel reductions are VPU adds, pixels fill sublane x lane.
    # TODO(synk): this crop assembly still round-trips through HBM via XLA
    # slice/flip/pad/stack; a manual make_async_copy gather from seg
    # (memory_space=pl.ANY) would remove that traffic for very large overlaps.
    crops1, crops2 = [], []
    for i, (y10, x10, y11, x11, y20, x20, y21, x21, ok) in enumerate(meta):
        if not ok:   # degenerate overlap contributes 0 (matches reference)
            z = jnp.zeros((C, s_total, 128), seg.dtype)
            crops1.append(z)
            crops2.append(z)
            continue
        h1, w1 = y11 - y10, x11 - x10
        h2, w2 = y21 - y20, x21 - x20
        c1 = seg[2 * i, :, y10:y11, x10:x11].reshape(C, h1 * w1)
        im2 = seg[2 * i + 1, :, y20:y21, x20:x21]
        if flips[i] == -1:
            im2 = jnp.flip(im2, axis=2)
        c2 = im2.reshape(C, h2 * w2)
        crops1.append(jnp.pad(c1, ((0, 0), (0, p_pad - h1 * w1)))
                      .reshape(C, s_total, 128))
        crops2.append(jnp.pad(c2, ((0, 0), (0, p_pad - h2 * w2)))
                      .reshape(C, s_total, 128))
    crops1 = jnp.stack(crops1)                         # (len_img, C, S, 128)
    crops2 = jnp.stack(crops2)
    npix = jnp.asarray(np.asarray(npix_static, np.int32))

    sub_tile = _pick_sub_tile(s_total, 2 * C * 128 * itemsize)
    n_t = pl.cdiv(s_total, sub_tile)
    step_bytes = 2 * C * sub_tile * 128 * itemsize + 8 * 128 * 4

    kernel = functools.partial(_pair_kernel, sub_tile=sub_tile, n_channels=C)
    partials = pl.pallas_call(
        kernel,
        out_shape=jax.ShapeDtypeStruct((len_img, 8, 128), jnp.float32),
        grid_spec=pltpu.PrefetchScalarGridSpec(
            num_scalar_prefetch=1,
            grid=(len_img, n_t),
            in_specs=[
                pl.BlockSpec((None, C, sub_tile, 128), lambda i, t, nv: (i, 0, t, 0)),
                pl.BlockSpec((None, C, sub_tile, 128), lambda i, t, nv: (i, 0, t, 0)),
            ],
            out_specs=pl.BlockSpec((None, 8, 128), lambda i, t, nv: (i, 0, 0)),
        ),
        compiler_params=pltpu.CompilerParams(
            dimension_semantics=("parallel", "arbitrary"),
            vmem_limit_bytes=_vmem_limit(step_bytes)),
    )(npix, crops1, crops2)

    sums = partials[:, 0, :3]                          # (len_img, 3)
    inv_p = np.asarray([1.0 / p if p > 0 else 0.0 for p in npix_static], np.float32)
    mse = jnp.sum(sums[:, 0] * jnp.asarray(inv_p / C)) / len_img
    ce_1_2 = jnp.sum(sums[:, 1] * jnp.asarray(inv_p)) / len_img
    ce_2_1 = jnp.sum(sums[:, 2] * jnp.asarray(inv_p)) / len_img
    return mse, ce_1_2, ce_2_1


# ----------------------------------------------------------------------------
# Kernel 3: fused SimSiam negative-cosine (both directions, rsqrt normalize)
# ----------------------------------------------------------------------------
def _negcos_pair_kernel(p_ref, zsw_ref, out_ref):
    pv = p_ref[...].astype(jnp.float32)                # (N, D)
    zv = zsw_ref[...].astype(jnp.float32)              # (N, D), adjacent rows pre-swapped
    eps2 = jnp.float32(1e-24)                          # F.normalize: max(||v||, 1e-12)
    pn = pv * jax.lax.rsqrt(jnp.maximum(jnp.sum(pv * pv, axis=1, keepdims=True), eps2))
    zn = zv * jax.lax.rsqrt(jnp.maximum(jnp.sum(zv * zv, axis=1, keepdims=True), eps2))
    total = jnp.sum(pn * zn)
    # negcos(p1, z2)/2 + negcos(p2, z1)/2 == -total / N
    lane = jax.lax.broadcasted_iota(jnp.int32, (1, 128), 1)
    out_ref[...] = jnp.where(lane == 0, -total / pv.shape[0], 0.0)


def cosine_loss(p, z):
    n, d = p.shape
    z_sw = z.reshape(n // 2, 2, d)[:, ::-1, :].reshape(n, d)   # swap each (z1, z2) pair
    out = pl.pallas_call(
        _negcos_pair_kernel,
        out_shape=jax.ShapeDtypeStruct((1, 128), jnp.float32),
    )(p, z_sw)
    return out[0, 0]


# ----------------------------------------------------------------------------
# Mixed_Loss forward
# ----------------------------------------------------------------------------
def mixed_loss(seg, z, p, overlap, flips, labels, ignore_index=IGNORE_INDEX):
    N, C, H, W = seg.shape
    len_img = N // 2

    # per-image ex_labels ignore-box -> SMEM scalar-prefetch data for the fused CE
    boxes_np = np.zeros((N, 4), np.int32)
    for i in range(len_img):
        (y10, x10), (y11, x11) = overlap[i][0]
        (y20, x20), (y21, x21) = overlap[i][1]
        boxes_np[2 * i] = (y10, y11, x10, x11)
        boxes_np[2 * i + 1] = (y20, y21, x20, x21)
    boxes = jnp.asarray(boxes_np)

    mse, ce_1_2, ce_2_1 = pair_losses(seg, overlap, flips)
    sym_ce = 0.5 * (ce_1_2 + ce_2_1)
    ce, ex_ce = fused_cross_entropy(seg, labels, boxes, ignore_index)
    cosine = cosine_loss(p, z)

    return (mse, ce_1_2, ce_2_1, sym_ce, ce, ex_ce, cosine)


# ----------------------------------------------------------------------------
if __name__ == "__main__":
    key = jax.random.PRNGKey(0)
    k_seg, k_lbl, k_z, k_p = jax.random.split(key, 4)

    N, C, H, W = 4, 8, 16, 16      # 2 augmented pairs
    D = 32                         # embedding dim

    seg = jax.random.normal(k_seg, (N, C, H, W), dtype=jnp.float32)
    labels = jax.random.randint(k_lbl, (N, H, W), 0, C, dtype=jnp.int32)
    z = jax.random.normal(k_z, (N, D), dtype=jnp.float32)
    p = jax.random.normal(k_p, (N, D), dtype=jnp.float32)

    # static overlap metadata: overlap[i][view][corner] = (row, col); equal crop sizes
    overlap = [
        [[(2, 3), (10, 11)], [(4, 5), (12, 13)]],    # pair 0: 8x8 crops
        [[(0, 0), (6, 10)], [(10, 6), (16, 16)]],    # pair 1: 6x10 crops
    ]
    flips = [1, -1]

    out = mixed_loss(seg, z, p, overlap, flips, labels)
    out = jax.block_until_ready(out)
    print("KERNEL_OK")
</pallas_src>

<mosaic_0001>
module attributes {stable_mosaic.version = 11 : i64} {
  func.func @_pair_kernel(%arg0: i32, %arg1: i32, %arg2: memref<2xi32, #tpu.memory_space<smem>>, %arg3: memref<1x8x1x128xf32, #tpu.memory_space<vmem>>, %arg4: memref<1x8x1x128xf32, #tpu.memory_space<vmem>>, %arg5: memref<1x8x128xf32, #tpu.memory_space<vmem>>) attributes {dimension_semantics = [#tpu.dimension_semantics<parallel>, #tpu.dimension_semantics<arbitrary>], iteration_bounds = array<i64: 2, 1>, scalar_prefetch = 1 : i64, scratch_operands = 0 : i64, tpu.core_type = #tpu.core_type<tc>, window_params = [{transform_indices = @transform_0, window_bounds = array<i64: 1, 8, 1, 128>}, {transform_indices = @transform_1, window_bounds = array<i64: 1, 8, 1, 128>}, {transform_indices = @transform_2, window_bounds = array<i64: 1, 8, 128>}]} {
    %c0_i32 = arith.constant 0 : i32
    %0 = arith.cmpi eq, %arg1, %c0_i32 : i32
    %1 = arith.extui %0 : i1 to i32
    %c0_i32_0 = arith.constant 0 : i32
    %2 = arith.cmpi ne, %1, %c0_i32_0 : i32
    scf.if %2 {
      %cst = arith.constant 0.000000e+00 : f32
      %9 = vector.broadcast %cst : f32 to vector<8x128xf32>
      %c0 = arith.constant 0 : index
      %c0_2 = arith.constant 0 : index
      %c0_3 = arith.constant 0 : index
      %10 = vector.load %arg5[%c0, %c0_2, %c0_3] : memref<1x8x128xf32, #tpu.memory_space<vmem>>, vector<1x8x128xf32>
      %11 = vector.shape_cast %10 : vector<1x8x128xf32> to vector<8x128xf32>
      %12 = vector.shape_cast %9 : vector<8x128xf32> to vector<1x8x128xf32>
      tpu.vector_store %arg5[%c0, %c0_2, %c0_3], %12 {strides = array<i32>} : memref<1x8x128xf32, #tpu.memory_space<vmem>>, vector<1x8x128xf32>,
    } else {
    }
    %3 = arith.index_cast %arg0 : i32 to index
    %4 = memref.load %arg2[%3] : memref<2xi32, #tpu.memory_space<smem>>
    %c128_i32 = arith.constant 128 : i32
    %5 = arith.muli %arg1, %c128_i32 : i32
    %6 = arith.cmpi slt, %5, %4 : i32
    %7 = arith.extui %6 : i1 to i32
    %c0_i32_1 = arith.constant 0 : i32
    %8 = arith.cmpi ne, %7, %c0_i32_1 : i32
    scf.if %8 {
      %c0 = arith.constant 0 : index
      %c0_2 = arith.constant 0 : index
      %c0_3 = arith.constant 0 : index
      %c0_4 = arith.constant 0 : index
      %9 = vector.load %arg3[%c0, %c0_2, %c0_3, %c0_4] : memref<1x8x1x128xf32, #tpu.memory_space<vmem>>, vector<1x8x1x128xf32>
      %10 = vector.shape_cast %9 : vector<1x8x1x128xf32> to vector<8x1x128xf32>
      %c0_5 = arith.constant 0 : index
      %c0_6 = arith.constant 0 : index
      %c0_7 = arith.constant 0 : index
      %c0_8 = arith.constant 0 : index
      %11 = vector.load %arg4[%c0_5, %c0_6, %c0_7, %c0_8] : memref<1x8x1x128xf32, #tpu.memory_space<vmem>>, vector<1x8x1x128xf32>
      %12 = vector.shape_cast %11 : vector<1x8x1x128xf32> to vector<8x1x128xf32>
      %13 = tpu.iota {dimensions = array<i32: 0>} : vector<1x128xi32>
      %14 = tpu.iota {dimensions = array<i32: 1>} : vector<1x128xi32>
      %c1_i32 = arith.constant 1 : i32
      %15 = arith.muli %arg1, %c1_i32 : i32
      %16 = vector.broadcast %15 : i32 to vector<1x128xi32>
      %17 = arith.addi %16, %13 : vector<1x128xi32>
      %c128_i32_9 = arith.constant 128 : i32
      %18 = vector.broadcast %c128_i32_9 : i32 to vector<1x128xi32>
      %19 = arith.muli %17, %18 : vector<1x128xi32>
      %20 = arith.addi %19, %14 : vector<1x128xi32>
      %21 = vector.broadcast %4 : i32 to vector<1x128xi32>
      %22 = arith.cmpi slt, %20, %21 : vector<1x128xi32>
      %23 = arith.subf %10, %12 : vector<8x1x128xf32>
      %24 = arith.mulf %23, %23 : vector<8x1x128xf32>
      %cst = arith.constant dense<0.000000e+00> : vector<1x128xf32>
      %25 = vector.multi_reduction <add>, %24, %cst [0] : vector<8x1x128xf32> to vector<1x128xf32>
      %cst_10 = arith.constant 0.000000e+00 : f32
      %26 = vector.broadcast %cst_10 : f32 to vector<1x128xf32>
      %27 = arith.select %22, %25, %26 : vector<1x128xi1>, vector<1x128xf32>
      %28 = vector.shape_cast %27 : vector<1x128xf32> to vector<1x1x128xf32>
      %cst_11 = arith.constant dense<0.000000e+00> : vector<1xf32>
      %29 = vector.multi_reduction <add>, %28, %cst_11 [1, 2] : vector<1x1x128xf32> to vector<1xf32>
      %30 = vector.shape_cast %29 : vector<1xf32> to vector<1x1x1xf32>
      %31 = vector.extract %30[0, 0, 0] : f32 from vector<1x1x1xf32>
      %32 = tpu.iota {dimensions = array<i32: 0>} : vector<8x1x128xi32>
      %cst_12 = arith.constant dense<0xFF800000> : vector<1x128xf32>
      %33 = vector.multi_reduction <maximumf>, %10, %cst_12 [0] : vector<8x1x128xf32> to vector<1x128xf32>
      %34 = vector.shape_cast %33 : vector<1x128xf32> to vector<1x1x128xf32>
      %cst_13 = arith.constant dense<0xFF800000> : vector<1x128xf32>
      %35 = vector.multi_reduction <maximumf>, %12, %cst_13 [0] : vector<8x1x128xf32> to vector<1x128xf32>
      %36 = vector.shape_cast %35 : vector<1x128xf32> to vector<1x1x128xf32>
      %37 = vector.shape_cast %34 : vector<1x1x128xf32> to vector<1x128xf32>
      %38 = vector.broadcast %34 : vector<1x1x128xf32> to vector<8x1x128xf32>
      %39 = arith.subf %10, %38 : vector<8x1x128xf32>
      %40 = math.exp %39 : vector<8x1x128xf32>
      %cst_14 = arith.constant dense<0.000000e+00> : vector<1x128xf32>
      %41 = vector.multi_reduction <add>, %40, %cst_14 [0] : vector<8x1x128xf32> to vector<1x128xf32>
      %42 = math.log %41 : vector<1x128xf32>
      %43 = arith.addf %37, %42 : vector<1x128xf32>
      %44 = vector.shape_cast %36 : vector<1x1x128xf32> to vector<1x128xf32>
      %45 = vector.broadcast %36 : vector<1x1x128xf32> to vector<8x1x128xf32>
      %46 = arith.subf %12, %45 : vector<8x1x128xf32>
      %47 = math.exp %46 : vector<8x1x128xf32>
      %cst_15 = arith.constant dense<0.000000e+00> : vector<1x128xf32>
      %48 = vector.multi_reduction <add>, %47, %cst_15 [0] : vector<8x1x128xf32> to vector<1x128xf32>
      %49 = math.log %48 : vector<1x128xf32>
      %50 = arith.addf %44, %49 : vector<1x128xf32>
      %51 = vector.broadcast %34 : vector<1x1x128xf32> to vector<8x1x128xf32>
      %52 = arith.cmpf oeq, %10, %51 : vector<8x1x128xf32>
      %c8_i32 = arith.constant 8 : i32
      %53 = vector.broadcast %c8_i32 : i32 to vector<8x1x128xi32>
      %54 = arith.select %52, %32, %53 : vector<8x1x128xi1>, vector<8x1x128xi32>
      %cst_16 = arith.constant dense<2147483647> : vector<1x128xi32>
      %55 = vector.multi_reduction <minsi>, %54, %cst_16 [0] : vector<8x1x128xi32> to vector<1x128xi32>
      %56 = vector.broadcast %36 : vector<1x1x128xf32> to vector<8x1x128xf32>
      %57 = arith.cmpf oeq, %12, %56 : vector<8x1x128xf32>
      %c8_i32_17 = arith.constant 8 : i32
      %58 = vector.broadcast %c8_i32_17 : i32 to vector<8x1x128xi32>
      %59 = arith.select %57, %32, %58 : vector<8x1x128xi1>, vector<8x1x128xi32>
      %cst_18 = arith.constant dense<2147483647> : vector<1x128xi32>
      %60 = vector.multi_reduction <minsi>, %59, %cst_18 [0] : vector<8x1x128xi32> to vector<1x128xi32>
      %61 = vector.shape_cast %55 : vector<1x128xi32> to vector<1x1x128xi32>
      %62 = vector.broadcast %61 : vector<1x1x128xi32> to vector<8x1x128xi32>
      %63 = arith.cmpi eq, %32, %62 : vector<8x1x128xi32>
      %64 = arith.extui %63 : vector<8x1x128xi1> to vector<8x1x128xi32>
      %65 = arith.sitofp %64 : vector<8x1x128xi32> to vector<8x1x128xf32>
      %66 = vector.shape_cast %60 : vector<1x128xi32> to vector<1x1x128xi32>
      %67 = vector.broadcast %66 : vector<1x1x128xi32> to vector<8x1x128xi32>
      %68 = arith.cmpi eq, %32, %67 : vector<8x1x128xi32>
      %69 = arith.extui %68 : vector<8x1x128xi1> to vector<8x1x128xi32>
      %70 = arith.sitofp %69 : vector<8x1x128xi32> to vector<8x1x128xf32>
      %71 = arith.mulf %70, %10 : vector<8x1x128xf32>
      %cst_19 = arith.constant dense<0.000000e+00> : vector<1x128xf32>
      %72 = vector.multi_reduction <add>, %71, %cst_19 [0] : vector<8x1x128xf32> to vector<1x128xf32>
      %73 = arith.mulf %65, %12 : vector<8x1x128xf32>
      %cst_20 = arith.constant dense<0.000000e+00> : vector<1x128xf32>
      %74 = vector.multi_reduction <add>, %73, %cst_20 [0] : vector<8x1x128xf32> to vector<1x128xf32>
      %75 = arith.subf %43, %72 : vector<1x128xf32>
      %cst_21 = arith.constant 0.000000e+00 : f32
      %76 = vector.broadcast %cst_21 : f32 to vector<1x128xf32>
      %77 = arith.select %22, %75, %76 : vector<1x128xi1>, vector<1x128xf32>
      %78 = vector.shape_cast %77 : vector<1x128xf32> to vector<1x1x128xf32>
      %cst_22 = arith.constant dense<0.000000e+00> : vector<1xf32>
      %79 = vector.multi_reduction <add>, %78, %cst_22 [1, 2] : vector<1x1x128xf32> to vector<1xf32>
      %80 = vector.shape_cast %79 : vector<1xf32> to vector<1x1x1xf32>
      %81 = vector.extract %80[0, 0, 0] : f32 from vector<1x1x1xf32>
      %82 = arith.subf %50, %74 : vector<1x128xf32>
      %cst_23 = arith.constant 0.000000e+00 : f32
      %83 = vector.broadcast %cst_23 : f32 to vector<1x128xf32>
      %84 = arith.select %22, %82, %83 : vector<1x128xi1>, vector<1x128xf32>
      %85 = vector.shape_cast %84 : vector<1x128xf32> to vector<1x1x128xf32>
      %cst_24 = arith.constant dense<0.000000e+00> : vector<1xf32>
      %86 = vector.multi_reduction <add>, %85, %cst_24 [1, 2] : vector<1x1x128xf32> to vector<1xf32>
      %87 = vector.shape_cast %86 : vector<1xf32> to vector<1x1x1xf32>
      %88 = vector.extract %87[0, 0, 0] : f32 from vector<1x1x1xf32>
      %c0_25 = arith.constant 0 : index
      %c0_26 = arith.constant 0 : index
      %c0_27 = arith.constant 0 : index
      %89 = vector.load %arg5[%c0_25, %c0_26, %c0_27] : memref<1x8x128xf32, #tpu.memory_space<vmem>>, vector<1x8x128xf32>
      %90 = vector.shape_cast %89 : vector<1x8x128xf32> to vector<8x128xf32>
      %91 = tpu.iota {dimensions = array<i32: 1>} : vector<8x128xi32>
      %92 = tpu.iota {dimensions = array<i32: 0>} : vector<8x128xi32>
      %c0_i32_28 = arith.constant 0 : i32
      %93 = vector.broadcast %c0_i32_28 : i32 to vector<8x128xi32>
      %94 = arith.cmpi eq, %92, %93 : vector<8x128xi32>
      %cst_29 = arith.constant 0.000000e+00 : f32
      %95 = vector.broadcast %cst_29 : f32 to vector<8x128xf32>
      %c0_i32_30 = arith.constant 0 : i32
      %96 = vector.broadcast %c0_i32_30 : i32 to vector<8x128xi32>
      %97 = arith.cmpi eq, %91, %96 : vector<8x128xi32>
      %98 = arith.andi %94, %97 : vector<8x128xi1>
      %cst_31 = arith.constant 0.000000e+00 : f32
      %99 = vector.broadcast %31 : f32 to vector<8x128xf32>
      %100 = vector.broadcast %cst_31 : f32 to vector<8x128xf32>
      %101 = arith.select %98, %99, %100 : vector<8x128xi1>, vector<8x128xf32>
      %102 = arith.addf %95, %101 : vector<8x128xf32>
      %c1_i32_32 = arith.constant 1 : i32
      %103 = vector.broadcast %c1_i32_32 : i32 to vector<8x128xi32>
      %104 = arith.cmpi eq, %91, %103 : vector<8x128xi32>
      %105 = arith.andi %94, %104 : vector<8x128xi1>
      %cst_33 = arith.constant 0.000000e+00 : f32
      %106 = vector.broadcast %81 : f32 to vector<8x128xf32>
      %107 = vector.broadcast %cst_33 : f32 to vector<8x128xf32>
      %108 = arith.select %105, %106, %107 : vector<8x128xi1>, vector<8x128xf32>
      %109 = arith.addf %102, %108 : vector<8x128xf32>
      %c2_i32 = arith.constant 2 : i32
      %110 = vector.broadcast %c2_i32 : i32 to vector<8x128xi32>
      %111 = arith.cmpi eq, %91, %110 : vector<8x128xi32>
      %112 = arith.andi %94, %111 : vector<8x128xi1>
      %cst_34 = arith.constant 0.000000e+00 : f32
      %113 = vector.broadcast %88 : f32 to vector<8x128xf32>
      %114 = vector.broadcast %cst_34 : f32 to vector<8x128xf32>
      %115 = arith.select %112, %113, %114 : vector<8x128xi1>, vector<8x128xf32>
      %116 = arith.addf %109, %115 : vector<8x128xf32>
      %117 = arith.addf %90, %116 : vector<8x128xf32>
      %c0_35 = arith.constant 0 : index
      %c0_36 = arith.constant 0 : index
      %c0_37 = arith.constant 0 : index
      %118 = vector.load %arg5[%c0_35, %c0_36, %c0_37] : memref<1x8x128xf32, #tpu.memory_space<vmem>>, vector<1x8x128xf32>
      %119 = vector.shape_cast %118 : vector<1x8x128xf32> to vector<8x128xf32>
      %120 = vector.shape_cast %117 : vector<8x128xf32> to vector<1x8x128xf32>
      tpu.vector_store %arg5[%c0_35, %c0_36, %c0_37], %120 {strides = array<i32>} : memref<1x8x128xf32, #tpu.memory_space<vmem>>, vector<1x8x128xf32>,
    } else {
    }
    return
  }
  func.func @transform_0(%arg0: i32, %arg1: i32, %arg2: memref<2xi32, #tpu.memory_space<smem>>) -> (i32, i32, i32, i32) {
    %c0_i32 = arith.constant 0 : i32
    %c0_i32_0 = arith.constant 0 : i32
    %c0_i32_1 = arith.constant 0 : i32
    return %arg0, %c0_i32, %arg1, %c0_i32_0 : i32, i32, i32, i32
  }
  func.func @transform_1(%arg0: i32, %arg1: i32, %arg2: memref<2xi32, #tpu.memory_space<smem>>) -> (i32, i32, i32, i32) {
    %c0_i32 = arith.constant 0 : i32
    %c0_i32_0 = arith.constant 0 : i32
    %c0_i32_1 = arith.constant 0 : i32
    return %arg0, %c0_i32, %arg1, %c0_i32_0 : i32, i32, i32, i32
  }
  func.func @transform_2(%arg0: i32, %arg1: i32, %arg2: memref<2xi32, #tpu.memory_space<smem>>) -> (i32, i32, i32) {
    %c0_i32 = arith.constant 0 : i32
    %c0_i32_0 = arith.constant 0 : i32
    %c0_i32_1 = arith.constant 0 : i32
    return %arg0, %c0_i32, %c0_i32_0 : i32, i32, i32
  }
}

</mosaic_0001>

<llo_original>
// kernel: tpu_custom_call.1
$region0: #{tpu_custom_call.1}
  #allocation0 [shape = 'u32[]', space=smem, size = 0x4, offset = 0x4, fixed_abs, tag = 'smem constant byte address 0x4 - core index']
  #allocation1 [shape = 'u32[144,128]{1,0:T(1,128)}', space=vmem, size = 0x12000, scoped, tag = 'internal scratch']
  #allocation2 [shape = 's32[1]{0}', space=sflag, size = 0x4, scoped, tag = 'scoped memory for tpu_custom_call.1']
  #allocation3 [shape = 'u8[512]{0}', space=smem, size = 0x200, scoped, tag = 'prefetched SMEM operand 0']
  %s0 = inlined_call_operand.hbm [shape: s32[2], index: 0, kind: input, shape index: {}]
  %s1 = inlined_call_operand.hbm [shape: f32[2,8,1,128], index: 1, kind: input, shape index: {}]
  %s2 = inlined_call_operand.hbm [shape: f32[2,8,1,128], index: 2, kind: input, shape index: {}]
  %s3 = inlined_call_operand.hbm [shape: f32[2,8,128], index: 3, kind: output, shape index: {}]
  %s4 = sld [smem:[#allocation0]]
  $region57: #{tpu_custom_call.1} parent=0
    _
  %s6 = ssub.s32 1, %s4
  %s7 = scalar_select 0, %s6, %s4
  %9 = dma.hbm_to_smem %s0, 16, [#allocation3], [#allocation2]
  %10 = dma.done [#allocation2], 16
  %11 = sfence
  $region1: #{tpu_custom_call.1} parent=0
    #allocation4 [shape = 'u8[8192]{0}', space=vmem, size = 0x2000, scoped, tag = 'input window, operand 1']
    #allocation5 [shape = 's32[2]{0}', space=sflag, size = 0x8, scoped, tag = 'scoped memory for tpu_custom_call.1']
    #allocation6 [shape = 's32[2]{0}', space=sflag, size = 0x8, scoped, tag = 'scoped memory for tpu_custom_call.1']
    #allocation7 [shape = 'u8[8192]{0}', space=vmem, size = 0x2000, scoped, tag = 'input window, operand 2']
    #allocation8 [shape = 's32[2]{0}', space=sflag, size = 0x8, scoped, tag = 'scoped memory for tpu_custom_call.1']
    #allocation9 [shape = 'u8[8192]{0}', space=vmem, size = 0x2000, scoped, tag = 'output window, operand 0']
    %12 = vsyncpa [#allocation5], 0
    %s13 = scalar_lea.sflag [#allocation5], 1
    %14 = vsyncpa %s13, 0
    %15 = vsyncpa [#allocation8], 0
    %s16 = scalar_lea.sflag [#allocation8], 1
    %17 = vsyncpa %s16, 0
    %18 = vsyncpa [#allocation6], 0
    %s19 = scalar_lea.sflag [#allocation6], 1
    %20 = vsyncpa %s19, 0
    loop: start=0, step=1, limit=4
    $region2: #{tpu_custom_call.1} parent=1 // loop_pre_header
      _
    $region3: #{tpu_custom_call.1} parent=1 // loop_header
      %s22 = sphi 0, %s26
      %p23 = scmp.ge.s32.totalorder %s22, 4
      %s29 = sphi 0, %s41
      %s30 = sphi 0, %s37
      %s31 = sphi 0, %s29
      %s32 = sphi 0, %s30
      %s33 = sphi 0, %s31
      %s34 = sphi 0, %s32
      %s46 = sphi 0, %s48
      %s49 = sphi 0, %s46
      %s50 = sphi 0, %s49
      %s66 = sphi 0, %s50
      %s74 = sphi 0, %s76
      %s77 = sphi 0, %s74
      %s78 = sphi 0, %s77
      %s94 = sphi 0, %s78
      %s100 = sphi 0, %s102
      %s103 = sphi 0, %s100
      %s104 = sphi 0, %s103
      %s120 = sphi 0, %s104
    $region4: #{tpu_custom_call.1} parent=1 // loop_header_branch
      %25 = sbr.rel (%p23) target = $region8
    $region5: #{tpu_custom_call.1} parent=1 // loop_body
      %s27 = ssub.s32 %s22, 1
      %s28 = ssub.s32 %s22, 2
      %s35 = sadd.s32 1, %s30
      %p36 = scmp.ge.s32.totalorder %s35, 1
      %s37 = scalar_select %p36, 0, %s35
      %s38 = sadd.s32 1, %s29
      %s39 = scalar_select %p36, %s38, %s29
      %p40 = scmp.ge.s32.totalorder %s39, 2
      %s41 = scalar_select %p40, 0, %s39
      %s42 = ssub.s32 %s29, %s41
      %s43 = ssub.s32 %s30, %s37
      %s44 = sor.u32 %s42, %s43
      %p45 = scmp.eq.s32.totalorder %s44, 0
      %s47 = sadd.s32 %s46, 1
      %s48 = scalar_select %p45, %s46, %s47
      %p51 = pneg %p45
      %p52 = scmp.eq.s32.totalorder %s22, 1
      %p53 = por %p51, %p52
      %p54 = scmp.ne.s32.totalorder %s46, %s49
      %p55 = scmp.eq.s32.totalorder %s22, 0
      %p56 = por %p54, %p55
      %p57 = scmp.ne.s32.totalorder %s46, %s49
      %p58 = scmp.eq.s32.totalorder %s27, 1
      %p59 = por %p57, %p58
      %p60 = scmp.ne.s32.totalorder %s49, %s50
      %p61 = scmp.eq.s32.totalorder %s27, 0
      %p62 = por %p60, %p61
      %p63 = scmp.ne.s32.totalorder %s49, %s50
      %p64 = scmp.eq.s32.totalorder %s28, 1
      %p65 = por %p63, %p64
      %p67 = scmp.ne.s32.totalorder %s50, %s66
      %p68 = scmp.eq.s32.totalorder %s28, 0
      %p69 = por %p67, %p68
      %s70 = ssub.s32 %s29, %s41
      %s71 = ssub.s32 %s30, %s37
      %s72 = sor.u32 %s70, %s71
      %p73 = scmp.eq.s32.totalorder %s72, 0
      %s75 = sadd.s32 %s74, 1
      %s76 = scalar_select %p73, %s74, %s75
      %p79 = pneg %p73
      %p80 = scmp.eq.s32.totalorder %s22, 1
      %p81 = por %p79, %p80
      %p82 = scmp.ne.s32.totalorder %s74, %s77
      %p83 = scmp.eq.s32.totalorder %s22, 0
      %p84 = por %p82, %p83
      %p85 = scmp.ne.s32.totalorder %s74, %s77
      %p86 = scmp.eq.s32.totalorder %s27, 1
      %p87 = por %p85, %p86
      %p88 = scmp.ne.s32.totalorder %s77, %s78
      %p89 = scmp.eq.s32.totalorder %s27, 0
      %p90 = por %p88, %p89
      %p91 = scmp.ne.s32.totalorder %s77, %s78
      %p92 = scmp.eq.s32.totalorder %s28, 1
      %p93 = por %p91, %p92
      %p95 = scmp.ne.s32.totalorder %s78, %s94
      %p96 = scmp.eq.s32.totalorder %s28, 0
      %p97 = por %p95, %p96
      %s98 = ssub.s32 %s29, %s41
      %p99 = scmp.eq.s32.totalorder %s98, 0
      %s101 = sadd.s32 %s100, 1
      %s102 = scalar_select %p99, %s100, %s101
      %p105 = pneg %p99
      %p106 = scmp.eq.s32.totalorder %s22, 1
      %p107 = por %p105, %p106
      %p108 = scmp.ne.s32.totalorder %s100, %s103
      %p109 = scmp.eq.s32.totalorder %s22, 0
      %p110 = por %p108, %p109
      %p111 = scmp.ne.s32.totalorder %s100, %s103
      %p112 = scmp.eq.s32.totalorder %s27, 1
      %p113 = por %p111, %p112
      %p114 = scmp.ne.s32.totalorder %s103, %s104
      %p115 = scmp.eq.s32.totalorder %s27, 0
      %p116 = por %p114, %p115
      %p117 = scmp.ne.s32.totalorder %s103, %s104
      %p118 = scmp.eq.s32.totalorder %s28, 1
      %p119 = por %p117, %p118
      %p121 = scmp.ne.s32.totalorder %s104, %s120
      %p122 = scmp.eq.s32.totalorder %s28, 0
      %p123 = por %p121, %p122
      %p124 = scmp.le.s32.totalorder 1, %s22
      %p125 = scmp.lt.s32.totalorder %s22, 3
      %p126 = pnand %p124, %p125
      %p127 = pneg %p126
      // Predicated region
      $region9: #{tpu_custom_call.1} parent=5 // pred_check
        _
      $region10: #{tpu_custom_call.1} parent=5 // pred_check_branch
        %129 = sbr.rel (%p126) target = $region12
      $region11: #{tpu_custom_call.1} parent=5 // pred_region
        %s130 = ssub.s32 %s22, 1
      $region12: #{tpu_custom_call.1} parent=5 // pred_fallthru
        _
      %p131 = scmp.lt.s32.totalorder %s22, 2
      // Predicated region
      $region13: #{tpu_custom_call.1} parent=5 // pred_check
        %p132 = pneg %p131
      $region14: #{tpu_custom_call.1} parent=5 // pred_check_branch
        %134 = sbr.rel (%p132) target = $region16
      $region15: #{tpu_custom_call.1} parent=5 // pred_region
        // Predicated region
        $region17: #{tpu_custom_call.1} parent=15 // pred_check
          %p135 = pneg %p56
        $region18: #{tpu_custom_call.1} parent=15 // pred_check_branch
          %137 = sbr.rel (%p135) target = $region20
        $region19: #{tpu_custom_call.1} parent=15 // pred_region
          %s138 = sand.u32 %s46, 1
          %s139 = scalar_lea.sflag [#allocation5], %s138
          %s140 = sand.u32 %s46, 1
          %s141 = smul.addr %s140, 8
          %s142 = scalar_lea.vmem [#allocation4], %s141
          %s144 = ssub.s32 128, 128
          %145 = vsyncadd %s139, %s144
          %s146 = smul.addr %s29, 8
          %s147 = sadd.s32 %s30, %s146
          %s148 = smul.addr %s147, 16
          %s149 = scalar_lea.hbm %s1, %s148
          %s150 = sshll.u32 %s142, 4
          %s151 = int_to_ptr.vmem [resolvable:$true] %s150
          %156 = dma.hbm_to_vmem [thread:$0]  %s149, 128, %s151, %s139, 16, 16, 1
        $region20: #{tpu_custom_call.1} parent=15 // pred_fallthru
          _
        // Predicated region
        $region21: #{tpu_custom_call.1} parent=15 // pred_check
          %p157 = pneg %p84
        $region22: #{tpu_custom_call.1} parent=15 // pred_check_branch
          %159 = sbr.rel (%p157) target = $region24
        $region23: #{tpu_custom_call.1} parent=15 // pred_region
          %s160 = sand.u32 %s74, 1
          %s161 = scalar_lea.sflag [#allocation8], %s160
          %s162 = sand.u32 %s74, 1
          %s163 = smul.addr %s162, 8
          %s164 = scalar_lea.vmem [#allocation7], %s163
          %s166 = ssub.s32 128, 128
          %167 = vsyncadd %s161, %s166
          %s168 = smul.addr %s29, 8
          %s169 = sadd.s32 %s30, %s168
          %s170 = smul.addr %s169, 16
          %s171 = scalar_lea.hbm %s2, %s170
          %s172 = sshll.u32 %s164, 4
          %s173 = int_to_ptr.vmem [resolvable:$true] %s172
          %178 = dma.hbm_to_vmem [thread:$0]  %s171, 128, %s173, %s161, 16, 16, 1
        $region24: #{tpu_custom_call.1} parent=15 // pred_fallthru
          _
      $region16: #{tpu_custom_call.1} parent=5 // pred_fallthru
        _
      %p179 = scmp.le.s32.totalorder 1, %s22
      %p180 = scmp.lt.s32.totalorder %s22, 3
      %p181 = pnand %p179, %p180
      %p182 = pneg %p181
      // Predicated region
      $region25: #{tpu_custom_call.1} parent=5 // pred_check
        _
      $region26: #{tpu_custom_call.1} parent=5 // pred_check_branch
        %184 = sbr.rel (%p181) target = $region28
      $region27: #{tpu_custom_call.1} parent=5 // pred_region
        %s185 = ssub.s32 %s22, 1
        %s186 = sand.u32 %s49, 1
        %s187 = scalar_lea.sflag [#allocation5], %s186
        %s188 = sand.u32 %s49, 1
        %s189 = smul.addr %s188, 8
        %s190 = scalar_lea.vmem [#allocation4], %s189
        // Predicated region
        $region29: #{tpu_custom_call.1} parent=27 // pred_check
          %p191 = pneg %p62
        $region30: #{tpu_custom_call.1} parent=27 // pred_check_branch
          %193 = sbr.rel (%p191) target = $region32
        $region31: #{tpu_custom_call.1} parent=27 // pred_region
          %194 = dma.done %s187, 128
        $region32: #{tpu_custom_call.1} parent=27 // pred_fallthru
          _
        %s195 = sand.u32 %s77, 1
        %s196 = scalar_lea.sflag [#allocation8], %s195
        %s197 = sand.u32 %s77, 1
        %s198 = smul.addr %s197, 8
        %s199 = scalar_lea.vmem [#allocation7], %s198
        // Predicated region
        $region33: #{tpu_custom_call.1} parent=27 // pred_check
          %p200 = pneg %p90
        $region34: #{tpu_custom_call.1} parent=27 // pred_check_branch
          %202 = sbr.rel (%p200) target = $region36
        $region35: #{tpu_custom_call.1} parent=27 // pred_region
          %203 = dma.done %s196, 128
        $region36: #{tpu_custom_call.1} parent=27 // pred_fallthru
          _
        %s204 = sand.u32 %s49, 1
        %s205 = scalar_lea.sflag [#allocation5], %s204
        %s206 = sand.u32 %s49, 1
        %s207 = smul.addr %s206, 8
        %s208 = scalar_lea.vmem [#allocation4], %s207
        %p209 = pneg %p62
        %p210 = pneg %p59
        %s211 = sand.u32 %s77, 1
        %s212 = scalar_lea.sflag [#allocation8], %s211
        %s213 = sand.u32 %s77, 1
        %s214 = smul.addr %s213, 8
        %s215 = scalar_lea.vmem [#allocation7], %s214
        %p216 = pneg %p90
        %p217 = pneg %p87
        %p218 = pneg %p116
        %p219 = pneg %p113
        %s220 = sand.u32 %s103, 1
        %s221 = scalar_lea.sflag [#allocation6], %s220
        %s222 = sand.u32 %s103, 1
        %s223 = smul.addr %s222, 8
        %s224 = scalar_lea.vmem [#allocation9], %s223
        %p225 = scmp.eq.s32.totalorder %s32, 0
        // Predicated region
        $region37: #{tpu_custom_call.1} parent=27 // pred_check
          %p226 = pneg %p225
        $region38: #{tpu_custom_call.1} parent=27 // pred_check_branch
          %228 = sbr.rel (%p226) target = $region40
        $region39: #{tpu_custom_call.1} parent=27 // pred_region
          %229 = vst [vmem:[%s224] sm:$0xff] 0.0
        $region40: #{tpu_custom_call.1} parent=27 // pred_fallthru
          _
        %s230 = sld [smem:[#allocation3 + %s31]]
        %s231 = smul.u32 %s32, 128
        %p232 = scmp.lt.s32.totalorder %s231, %s230
        // Predicated region
        $region41: #{tpu_custom_call.1} parent=27 // pred_check
          %p233 = pneg %p232
        $region42: #{tpu_custom_call.1} parent=27 // pred_check_branch
          %235 = sbr.rel (%p233) target = $region44
        $region43: #{tpu_custom_call.1} parent=27 // pred_region
          %v236 = vld [vmem:[%s190] sm:$0x1]
          %v237 = vld [vmem:[%s190 + $0x1] sm:$0x1]
          %v238 = vld [vmem:[%s190 + $0x2] sm:$0x1]
          %v239 = vld [vmem:[%s190 + $0x3] sm:$0x1]
          %v240 = vld [vmem:[%s190 + $0x4] sm:$0x1]
          %v241 = vld [vmem:[%s190 + $0x5] sm:$0x1]
          %v242 = vld [vmem:[%s190 + $0x6] sm:$0x1]
          %v243 = vld [vmem:[%s190 + $0x7] sm:$0x1]
          %v244 = vld [vmem:[%s199] sm:$0x1]
          %v245 = vld [vmem:[%s199 + $0x1] sm:$0x1]
          %v246 = vld [vmem:[%s199 + $0x2] sm:$0x1]
          %v247 = vld [vmem:[%s199 + $0x3] sm:$0x1]
          %v248 = vld [vmem:[%s199 + $0x4] sm:$0x1]
          %v249 = vld [vmem:[%s199 + $0x5] sm:$0x1]
          %v250 = vld [vmem:[%s199 + $0x6] sm:$0x1]
          %v251 = vld [vmem:[%s199 + $0x7] sm:$0x1]
          %v252 = vlaneseq
          %v253 = vshrl.u32 %v252, 7
          %v254 = vlaneseq
          %v255 = vand.u32 %v254, 127
          %v256 = vstv %s32
          %v257 = vadd.s32 %v256, %v253
          %v258 = vmul.u32 %v257, 128
          %v259 = vadd.s32 %v258, %v255
          %v260 = vstv %s230
          %vm261 = vcmp.lt.s32.totalorder %v259, %v260
          %v262 = vsub.f32 %v236, %v244
          %v263 = vsub.f32 %v237, %v245
          %v264 = vsub.f32 %v238, %v246
          %v265 = vsub.f32 %v239, %v247
          %v266 = vsub.f32 %v240, %v248
          %v267 = vsub.f32 %v241, %v249
          %v268 = vsub.f32 %v242, %v250
          %v269 = vsub.f32 %v243, %v251
          %v270 = vmul.f32 %v262, %v262
          %v271 = vmul.f32 %v263, %v263
          %v272 = vmul.f32 %v264, %v264
          %v273 = vmul.f32 %v265, %v265
          %v274 = vmul.f32 %v266, %v266
          %v275 = vmul.f32 %v267, %v267
          %v276 = vmul.f32 %v268, %v268
          %v277 = vmul.f32 %v269, %v269
          %vm278 = vcmask 1040384
          %v279 = vsel %vm278, %v270, 0.0
          %v280 = vsel %vm278, %v271, 0.0
          %v281 = vadd.f32 %v279, %v280
          %v282 = vsel %vm278, %v272, 0.0
          %v283 = vadd.f32 %v281, %v282
          %v284 = vsel %vm278, %v273, 0.0
          %v285 = vadd.f32 %v283, %v284
          %v286 = vsel %vm278, %v274, 0.0
          %v287 = vadd.f32 %v285, %v286
          %v288 = vsel %vm278, %v275, 0.0
          %v289 = vadd.f32 %v287, %v288
          %v290 = vsel %vm278, %v276, 0.0
          %v291 = vadd.f32 %v289, %v290
          %v292 = vsel %vm278, %v277, 0.0
          %v293 = vadd.f32 %v291, %v292
          %v294 = vsel %vm261, %v293, 0.0
          %v295 = vsel %vm278, %v294, 0.0
          %296 = vadd.xlane.f32.xlu0 %v295
          %v297 = vpop.xlane.xlu0 %296
          %v298 = vrot.slane %v297, 4
          %v299 = vadd.f32 %v297, %v298
          %v300 = vrot.slane %v299, 2
          %v301 = vadd.f32 %v299, %v300
          %v302 = vrot.slane %v301, 1
          %v303 = vadd.f32 %v301, %v302
          %s304 = vtos %v303
          %v305 = vlaneseq
          %vm306 = vcmp.ge.s32.totalorder %v305, 0
          %vm307 = vcmp.lt.s32.totalorder %v305, 128
          %vm308 = vmand %vm306, %vm307
          %v309 = vsel %vm308, %v236, -inf
          %v310 = vsel %vm308, %v237, -inf
          %v311 = vsel %vm308, %v238, -inf
          %v312 = vsel %vm308, %v239, -inf
          %v313 = vsel %vm308, %v240, -inf
          %v314 = vmax.f32 %v309, %v313
          %v315 = vsel %vm308, %v241, -inf
          %v316 = vmax.f32 %v310, %v315
          %v317 = vsel %vm308, %v242, -inf
          %v318 = vmax.f32 %v311, %v317
          %v319 = vsel %vm308, %v243, -inf
          %v320 = vmax.f32 %v312, %v319
          %v321 = vmax.f32 %v314, %v316
          %v322 = vmax.f32 %v318, %v320
          %v323 = vmax.f32 %v321, %v322
          %v324 = vsel %vm308, %v244, -inf
          %v325 = vsel %vm308, %v245, -inf
          %v326 = vsel %vm308, %v246, -inf
          %v327 = vsel %vm308, %v247, -inf
          %v328 = vsel %vm308, %v248, -inf
          %v329 = vmax.f32 %v324, %v328
          %v330 = vsel %vm308, %v249, -inf
          %v331 = vmax.f32 %v325, %v330
          %v332 = vsel %vm308, %v250, -inf
          %v333 = vmax.f32 %v326, %v332
          %v334 = vsel %vm308, %v251, -inf
          %v335 = vmax.f32 %v327, %v334
          %v336 = vmax.f32 %v329, %v331
          %v337 = vmax.f32 %v333, %v335
          %v338 = vmax.f32 %v336, %v337
          %v339 = vsub.f32 %v236, %v323
          %v340 = vsub.f32 %v237, %v323
          %v341 = vsub.f32 %v238, %v323
          %v342 = vsub.f32 %v239, %v323
          %v343 = vsub.f32 %v240, %v323
          %v344 = vsub.f32 %v241, %v323
          %v345 = vsub.f32 %v242, %v323
          %v346 = vsub.f32 %v243, %v323
          %v347 = vmul.f32 %v339, 1.442695
          %v348 = vpow.pop %v347
          %v349 = vmul.f32 %v340, 1.442695
          %v350 = vpow.pop %v349
          %v351 = vmul.f32 %v341, 1.442695
          %v352 = vpow.pop %v351
          %v353 = vmul.f32 %v342, 1.442695
          %v354 = vpow.pop %v353
          %v355 = vmul.f32 %v343, 1.442695
          %v356 = vpow.pop %v355
          %v357 = vmul.f32 %v344, 1.442695
          %v358 = vpow.pop %v357
          %v359 = vmul.f32 %v345, 1.442695
          %v360 = vpow.pop %v359
          %v361 = vmul.f32 %v346, 1.442695
          %v362 = vpow.pop %v361
          %v363 = vsel %vm278, %v348, 0.0
          %v364 = vsel %vm278, %v350, 0.0
          %v365 = vadd.f32 %v363, %v364
          %v366 = vsel %vm278, %v352, 0.0
          %v367 = vadd.f32 %v365, %v366
          %v368 = vsel %vm278, %v354, 0.0
          %v369 = vadd.f32 %v367, %v368
          %v370 = vsel %vm278, %v356, 0.0
          %v371 = vadd.f32 %v369, %v370
          %v372 = vsel %vm278, %v358, 0.0
          %v373 = vadd.f32 %v371, %v372
          %v374 = vsel %vm278, %v360, 0.0
          %v375 = vadd.f32 %v373, %v374
          %v376 = vsel %vm278, %v362, 0.0
          %v377 = vadd.f32 %v375, %v376
          %v378 = vlog2.pop %v377
          %v379 = vmul.f32 %v378, 0.6931472
          %v380 = vadd.f32 %v323, %v379
          %v381 = vsub.f32 %v244, %v338
          %v382 = vsub.f32 %v245, %v338
          %v383 = vsub.f32 %v246, %v338
          %v384 = vsub.f32 %v247, %v338
          %v385 = vsub.f32 %v248, %v338
          %v386 = vsub.f32 %v249, %v338
          %v387 = vsub.f32 %v250, %v338
          %v388 = vsub.f32 %v251, %v338
          %v389 = vmul.f32 %v381, 1.442695
          %v390 = vpow.pop %v389
          %v391 = vmul.f32 %v382, 1.442695
          %v392 = vpow.pop %v391
          %v393 = vmul.f32 %v383, 1.442695
          %v394 = vpow.pop %v393
          %v395 = vmul.f32 %v384, 1.442695
          %v396 = vpow.pop %v395
          %v397 = vmul.f32 %v385, 1.442695
          %v398 = vpow.pop %v397
          %v399 = vmul.f32 %v386, 1.442695
          %v400 = vpow.pop %v399
          %v401 = vmul.f32 %v387, 1.442695
          %v402 = vpow.pop %v401
          %v403 = vmul.f32 %v388, 1.442695
          %v404 = vpow.pop %v403
          %v405 = vsel %vm278, %v390, 0.0
          %v406 = vsel %vm278, %v392, 0.0
          %v407 = vadd.f32 %v405, %v406
          %v408 = vsel %vm278, %v394, 0.0
          %v409 = vadd.f32 %v407, %v408
          %v410 = vsel %vm278, %v396, 0.0
          %v411 = vadd.f32 %v409, %v410
          %v412 = vsel %vm278, %v398, 0.0
          %v413 = vadd.f32 %v411, %v412
          %v414 = vsel %vm278, %v400, 0.0
          %v415 = vadd.f32 %v413, %v414
          %v416 = vsel %vm278, %v402, 0.0
          %v417 = vadd.f32 %v415, %v416
          %v418 = vsel %vm278, %v404, 0.0
          %v419 = vadd.f32 %v417, %v418
          %v420 = vlog2.pop %v419
          %v421 = vmul.f32 %v420, 0.6931472
          %v422 = vadd.f32 %v338, %v421
          %vm423 = vcmp.eq.f32.partialorder %v236, %v323
          %vm424 = vcmp.eq.f32.partialorder %v237, %v323
          %vm425 = vcmp.eq.f32.partialorder %v238, %v323
          %vm426 = vcmp.eq.f32.partialorder %v239, %v323
          %vm427 = vcmp.eq.f32.partialorder %v240, %v323
          %vm428 = vcmp.eq.f32.partialorder %v241, %v323
          %vm429 = vcmp.eq.f32.partialorder %v242, %v323
          %vm430 = vcmp.eq.f32.partialorder %v243, %v323
          %v431 = vsel %vm423, 0, 8
          %v432 = vsel %vm424, 1, 8
          %v433 = vsel %vm425, 2, 8
          %v434 = vsel %vm426, 3, 8
          %v435 = vsel %vm427, 4, 8
          %v436 = vsel %vm428, 5, 8
          %v437 = vsel %vm429, 6, 8
          %v438 = vsel %vm430, 7, 8
          %v439 = vsel %vm308, %v431, 2147483647
          %v440 = vsel %vm308, %v432, 2147483647
          %v441 = vsel %vm308, %v433, 2147483647
          %v442 = vsel %vm308, %v434, 2147483647
          %v443 = vsel %vm308, %v435, 2147483647
          %vm444 = vcmp.lt.s32.totalorder %v439, %v443
          %v445 = vsel %vm444, %v439, %v443
          %v446 = vsel %vm308, %v436, 2147483647
          %vm447 = vcmp.lt.s32.totalorder %v440, %v446
          %v448 = vsel %vm447, %v440, %v446
          %v449 = vsel %vm308, %v437, 2147483647
          %vm450 = vcmp.lt.s32.totalorder %v441, %v449
          %v451 = vsel %vm450, %v441, %v449
          %v452 = vsel %vm308, %v438, 2147483647
          %vm453 = vcmp.lt.s32.totalorder %v442, %v452
          %v454 = vsel %vm453, %v442, %v452
          %vm455 = vcmp.lt.s32.totalorder %v445, %v448
          %v456 = vsel %vm455, %v445, %v448
          %vm457 = vcmp.lt.s32.totalorder %v451, %v454
          %v458 = vsel %vm457, %v451, %v454
          %vm459 = vcmp.lt.s32.totalorder %v456, %v458
          %v460 = vsel %vm459, %v456, %v458
          %vm461 = vcmp.eq.f32.partialorder %v244, %v338
          %vm462 = vcmp.eq.f32.partialorder %v245, %v338
          %vm463 = vcmp.eq.f32.partialorder %v246, %v338
          %vm464 = vcmp.eq.f32.partialorder %v247, %v338
          %vm465 = vcmp.eq.f32.partialorder %v248, %v338
          %vm466 = vcmp.eq.f32.partialorder %v249, %v338
          %vm467 = vcmp.eq.f32.partialorder %v250, %v338
          %vm468 = vcmp.eq.f32.partialorder %v251, %v338
          %v469 = vsel %vm461, 0, 8
          %v470 = vsel %vm462, 1, 8
          %v471 = vsel %vm463, 2, 8
          %v472 = vsel %vm464, 3, 8
          %v473 = vsel %vm465, 4, 8
          %v474 = vsel %vm466, 5, 8
          %v475 = vsel %vm467, 6, 8
          %v476 = vsel %vm468, 7, 8
          %v477 = vsel %vm308, %v469, 2147483647
          %v478 = vsel %vm308, %v470, 2147483647
          %v479 = vsel %vm308, %v471, 2147483647
          %v480 = vsel %vm308, %v472, 2147483647
          %v481 = vsel %vm308, %v473, 2147483647
          %vm482 = vcmp.lt.s32.totalorder %v477, %v481
          %v483 = vsel %vm482, %v477, %v481
          %v484 = vsel %vm308, %v474, 2147483647
          %vm485 = vcmp.lt.s32.totalorder %v478, %v484
          %v486 = vsel %vm485, %v478, %v484
          %v487 = vsel %vm308, %v475, 2147483647
          %vm488 = vcmp.lt.s32.totalorder %v479, %v487
          %v489 = vsel %vm488, %v479, %v487
          %v490 = vsel %vm308, %v476, 2147483647
          %vm491 = vcmp.lt.s32.totalorder %v480, %v490
          %v492 = vsel %vm491, %v480, %v490
          %vm493 = vcmp.lt.s32.totalorder %v483, %v486
          %v494 = vsel %vm493, %v483, %v486
          %vm495 = vcmp.lt.s32.totalorder %v489, %v492
          %v496 = vsel %vm495, %v489, %v492
          %vm497 = vcmp.lt.s32.totalorder %v494, %v496
          %v498 = vsel %vm497, %v494, %v496
          %vm499 = vcmp.eq.s32.totalorder %v460, 0
          %vm500 = vcmp.eq.s32.totalorder %v460, 1
          %vm501 = vcmp.eq.s32.totalorder %v460, 2
          %vm502 = vcmp.eq.s32.totalorder %v460, 3
          %vm503 = vcmp.eq.s32.totalorder %v460, 4
          %vm504 = vcmp.eq.s32.totalorder %v460, 5
          %vm505 = vcmp.eq.s32.totalorder %v460, 6
          %vm506 = vcmp.eq.s32.totalorder %v460, 7
          %v507 = vsel %vm499, 1, 0
          %v508 = vsel %vm500, 1, 0
          %v509 = vsel %vm501, 1, 0
          %v510 = vsel %vm502, 1, 0
          %v511 = vsel %vm503, 1, 0
          %v512 = vsel %vm504, 1, 0
          %v513 = vsel %vm505, 1, 0
          %v514 = vsel %vm506, 1, 0
          %v515 = vcvt.s32.f32 %v507
          %v516 = vcvt.s32.f32 %v508
          %v517 = vcvt.s32.f32 %v509
          %v518 = vcvt.s32.f32 %v510
          %v519 = vcvt.s32.f32 %v511
          %v520 = vcvt.s32.f32 %v512
          %v521 = vcvt.s32.f32 %v513
          %v522 = vcvt.s32.f32 %v514
          %vm523 = vcmp.eq.s32.totalorder %v498, 0
          %vm524 = vcmp.eq.s32.totalorder %v498, 1
          %vm525 = vcmp.eq.s32.totalorder %v498, 2
          %vm526 = vcmp.eq.s32.totalorder %v498, 3
          %vm527 = vcmp.eq.s32.totalorder %v498, 4
          %vm528 = vcmp.eq.s32.totalorder %v498, 5
          %vm529 = vcmp.eq.s32.totalorder %v498, 6
          %vm530 = vcmp.eq.s32.totalorder %v498, 7
          %v531 = vsel %vm523, 1, 0
          %v532 = vsel %vm524, 1, 0
          %v533 = vsel %vm525, 1, 0
          %v534 = vsel %vm526, 1, 0
          %v535 = vsel %vm527, 1, 0
          %v536 = vsel %vm528, 1, 0
          %v537 = vsel %vm529, 1, 0
          %v538 = vsel %vm530, 1, 0
          %v539 = vcvt.s32.f32 %v531
          %v540 = vcvt.s32.f32 %v532
          %v541 = vcvt.s32.f32 %v533
          %v542 = vcvt.s32.f32 %v534
          %v543 = vcvt.s32.f32 %v535
          %v544 = vcvt.s32.f32 %v536
          %v545 = vcvt.s32.f32 %v537
          %v546 = vcvt.s32.f32 %v538
          %v547 = vmul.f32 %v539, %v236
          %v548 = vmul.f32 %v540, %v237
          %v549 = vmul.f32 %v541, %v238
          %v550 = vmul.f32 %v542, %v239
          %v551 = vmul.f32 %v543, %v240
          %v552 = vmul.f32 %v544, %v241
          %v553 = vmul.f32 %v545, %v242
          %v554 = vmul.f32 %v546, %v243
          %v555 = vsel %vm278, %v547, 0.0
          %v556 = vsel %vm278, %v548, 0.0
          %v557 = vadd.f32 %v555, %v556
          %v558 = vsel %vm278, %v549, 0.0
          %v559 = vadd.f32 %v557, %v558
          %v560 = vsel %vm278, %v550, 0.0
          %v561 = vadd.f32 %v559, %v560
          %v562 = vsel %vm278, %v551, 0.0
          %v563 = vadd.f32 %v561, %v562
          %v564 = vsel %vm278, %v552, 0.0
          %v565 = vadd.f32 %v563, %v564
          %v566 = vsel %vm278, %v553, 0.0
          %v567 = vadd.f32 %v565, %v566
          %v568 = vsel %vm278, %v554, 0.0
          %v569 = vadd.f32 %v567, %v568
          %v570 = vmul.f32 %v515, %v244
          %v571 = vmul.f32 %v516, %v245
          %v572 = vmul.f32 %v517, %v246
          %v573 = vmul.f32 %v518, %v247
          %v574 = vmul.f32 %v519, %v248
          %v575 = vmul.f32 %v520, %v249
          %v576 = vmul.f32 %v521, %v250
          %v577 = vmul.f32 %v522, %v251
          %v578 = vsel %vm278, %v570, 0.0
          %v579 = vsel %vm278, %v571, 0.0
          %v580 = vadd.f32 %v578, %v579
          %v581 = vsel %vm278, %v572, 0.0
          %v582 = vadd.f32 %v580, %v581
          %v583 = vsel %vm278, %v573, 0.0
          %v584 = vadd.f32 %v582, %v583
          %v585 = vsel %vm278, %v574, 0.0
          %v586 = vadd.f32 %v584, %v585
          %v587 = vsel %vm278, %v575, 0.0
          %v588 = vadd.f32 %v586, %v587
          %v589 = vsel %vm278, %v576, 0.0
          %v590 = vadd.f32 %v588, %v589
          %v591 = vsel %vm278, %v577, 0.0
          %v592 = vadd.f32 %v590, %v591
          %v593 = vsub.f32 %v380, %v569
          %v594 = vsel %vm261, %v593, 0.0
          %v595 = vsel %vm278, %v594, 0.0
          %596 = vadd.xlane.f32.xlu0 %v595
          %v597 = vpop.xlane.xlu0 %596
          %v598 = vrot.slane %v597, 4
          %v599 = vadd.f32 %v597, %v598
          %v600 = vrot.slane %v599, 2
          %v601 = vadd.f32 %v599, %v600
          %v602 = vrot.slane %v601, 1
          %v603 = vadd.f32 %v601, %v602
          %s604 = vtos %v603
          %v605 = vsub.f32 %v422, %v592
          %v606 = vsel %vm261, %v605, 0.0
          %v607 = vsel %vm278, %v606, 0.0
          %608 = vadd.xlane.f32.xlu0 %v607
          %v609 = vpop.xlane.xlu0 %608
          %v610 = vrot.slane %v609, 4
          %v611 = vadd.f32 %v609, %v610
          %v612 = vrot.slane %v611, 2
          %v613 = vadd.f32 %v611, %v612
          %v614 = vrot.slane %v613, 1
          %v615 = vadd.f32 %v613, %v614
          %s616 = vtos %v615
          %v617 = vld [vmem:[%s224] sm:$0xff]
          %vm618 = vcmp.eq.s32.totalorder %v253, 0
          %vm619 = vcmp.eq.s32.totalorder %v255, 0
          %vm620 = vmand %vm618, %vm619
          %v621 = vstv %s304
          %v622 = vsel %vm620, %v621, 0.0
          %v623 = vadd.f32 %v622, 0.0
          %vm624 = vcmp.eq.s32.totalorder %v255, 1
          %vm625 = vmand %vm618, %vm624
          %v626 = vstv %s604
          %v627 = vsel %vm625, %v626, 0.0
          %v628 = vadd.f32 %v623, %v627
          %vm629 = vcmp.eq.s32.totalorder %v255, 2
          %vm630 = vmand %vm618, %vm629
          %v631 = vstv %s616
          %v632 = vsel %vm630, %v631, 0.0
          %v633 = vadd.f32 %v628, %v632
          %v634 = vadd.f32 %v617, %v633
          %635 = vst [vmem:[%s224] sm:$0xff] %v634
        $region44: #{tpu_custom_call.1} parent=27 // pred_fallthru
          _
        %s636 = sand.u32 %s103, 1
        %s637 = scalar_lea.sflag [#allocation6], %s636
        %s638 = sand.u32 %s103, 1
        %s639 = smul.addr %s638, 8
        %s640 = scalar_lea.vmem [#allocation9], %s639
        // Predicated region
        $region45: #{tpu_custom_call.1} parent=27 // pred_check
          %p641 = pneg %p113
        $region46: #{tpu_custom_call.1} parent=27 // pred_check_branch
          %643 = sbr.rel (%p641) target = $region48
        $region47: #{tpu_custom_call.1} parent=27 // pred_region
          %s645 = ssub.s32 128, 128
          %646 = vsyncadd %s637, %s645
          %s647 = smul.addr %s31, 128
          %s648 = scalar_lea.hbm %s3, %s647
          %s650 = sshll.u32 %s640, 4
          %s651 = int_to_ptr.vmem [resolvable:$true] %s650
          %653 = dma.vmem_to_hbm [thread:$0]  %s651, 128, %s648, %s637
        $region48: #{tpu_custom_call.1} parent=27 // pred_fallthru
          _
      $region28: #{tpu_custom_call.1} parent=5 // pred_fallthru
        _
      %p654 = scmp.le.s32.totalorder 2, %s22
      // Predicated region
      $region49: #{tpu_custom_call.1} parent=5 // pred_check
        %p655 = pneg %p654
      $region50: #{tpu_custom_call.1} parent=5 // pred_check_branch
        %657 = sbr.rel (%p655) target = $region52
      $region51: #{tpu_custom_call.1} parent=5 // pred_region
        %s658 = ssub.s32 %s22, 2
        // Predicated region
        $region53: #{tpu_custom_call.1} parent=51 // pred_check
          %p659 = pneg %p119
        $region54: #{tpu_custom_call.1} parent=51 // pred_check_branch
          %661 = sbr.rel (%p659) target = $region56
        $region55: #{tpu_custom_call.1} parent=51 // pred_region
          %s662 = sand.u32 %s104, 1
          %s663 = scalar_lea.sflag [#allocation6], %s662
          %s664 = sand.u32 %s104, 1
          %s665 = smul.addr %s664, 8
          %s666 = scalar_lea.vmem [#allocation9], %s665
          %667 = dma.done %s663, 128
        $region56: #{tpu_custom_call.1} parent=51 // pred_fallthru
          _
      $region52: #{tpu_custom_call.1} parent=5 // pred_fallthru
        _
    $region6: #{tpu_custom_call.1} parent=1 // loop_footer
      %s26 = sadd.s32 1, %s22
    $region7: #{tpu_custom_call.1} parent=1 // loop_footer_branch
      %21 = sbr.rel target = $region3
    $region8: #{tpu_custom_call.1} parent=1 // loop_exit
      _
    %668 = vsyncpa [#allocation5], 1
    %s669 = scalar_lea.sflag [#allocation5], 1
    %670 = vsyncpa %s669, 1
    %671 = vsyncpa [#allocation8], 1
    %s672 = scalar_lea.sflag [#allocation8], 1
    %673 = vsyncpa %s672, 1
    %674 = vsyncpa [#allocation6], 1
    %s675 = scalar_lea.sflag [#allocation6], 1
    %676 = vsyncpa %s675, 1

</llo_original>
